<compile_context>
chip_gen: v7x
topology: tpu7x:2x2x1
jax: 0.10.0
libtpu: 0.0.40
codegen_flags: <defaults>
</compile_context>

<pallas_src>
import functools
import math

import jax
import jax.numpy as jnp
from jax.experimental import pallas as pl
from jax.experimental.pallas import tpu as pltpu


def _round_up(x, n):
    return ((x + n - 1) // n) * n


def _arcmargin_kernel(x_ref, w_ref, lab_ref, out_ref, *, s, cos_m, sin_m, th,
                      mm, easy_margin, mxu_dtype):
    # x_ref: [TB, D], w_ref: [TC, D], lab_ref: [TB, 1] int32, out_ref: [TB, TC]
    eps2 = 1e-24  # == (F.normalize eps = 1e-12) ** 2

    x = x_ref[...]
    w = w_ref[...]

    # Row L2 norms in f32; rsqrt goes to the EUP slot (no VPU divides).
    xf = x.astype(jnp.float32)
    wf = w.astype(jnp.float32)
    inv_xn = jax.lax.rsqrt(
        jnp.maximum(jnp.sum(xf * xf, axis=-1, keepdims=True), eps2))  # [TB,1]
    inv_wn = jax.lax.rsqrt(
        jnp.maximum(jnp.sum(wf * wf, axis=-1, keepdims=True), eps2))  # [TC,1]

    # Normalize the W tile by multiplication (per-row scalar, lane broadcast)
    # and feed the MXU in mxu_dtype; contract last dims of both operands so no
    # transpose of W is ever materialized.
    wn = (wf * inv_wn).astype(mxu_dtype)
    raw = jax.lax.dot_general(
        x.astype(mxu_dtype), wn,
        dimension_numbers=(((1,), (1,)), ((), ())),
        preferred_element_type=jnp.float32)                           # [TB,TC]

    # Fold the x normalization into the epilogue ([TB,1] broadcast).
    cosine = raw * inv_xn

    # ArcFace margin math (clamped sqrt so float rounding can't produce NaN).
    sine = jnp.sqrt(jnp.maximum(1.0 - cosine * cosine, 0.0))
    phi = cosine * cos_m - sine * sin_m
    if easy_margin:
        phi = jnp.where(cosine > 0.0, phi, cosine)
    else:
        phi = jnp.where(cosine - th > 0.0, phi, cosine - mm)

    # one-hot blend as a single select, fused with the scale by s.
    tb, tc = cosine.shape
    col = pl.program_id(1) * tc + jax.lax.broadcasted_iota(
        jnp.int32, (tb, tc), 1)
    lab = lab_ref[...]                                                # [TB,1]
    out_ref[...] = (jnp.where(col == lab, phi, cosine) * s).astype(out_ref.dtype)


def arc_margin_product(x, weight, label, *, s=32.0, m=0.5, sub=1,
                       easy_margin=False, mxu_dtype=jnp.bfloat16,
                       block_b=128, block_c=512):
    """ArcFace head forward.

    x: [B, in_features] f32, weight: [out_features*sub, in_features] f32,
    label: [B] int class indices.  Returns [B, out_features] f32.
    """
    assert sub == 1, "sub > 1 not supported by this kernel"
    B, D = x.shape
    C, D2 = weight.shape
    assert D == D2

    cos_m = math.cos(m)
    sin_m = math.sin(m)
    th = math.cos(math.pi - m)
    mm = math.sin(math.pi - m) * m

    # Tile sizes: TB multiple of 8 (sublanes), TC multiple of 128 so the output
    # store path stays lane-dense.  Defaults sized for v6e-class VMEM; shrink
    # block_c (e.g. 256) for v5e / v7x budgets if needed.
    tb = min(block_b, _round_up(B, 8))
    tc = min(block_c, _round_up(C, 128))
    bp = _round_up(B, tb)
    cp = _round_up(C, tc)

    # Stream the MXU operands in mxu_dtype (bf16 halves W HBM traffic).
    xd = x.astype(mxu_dtype)
    wd = weight.astype(mxu_dtype)
    lab = label.astype(jnp.int32).reshape(B, 1)
    if bp != B:
        xd = jnp.pad(xd, ((0, bp - B), (0, 0)))
        lab = jnp.pad(lab, ((0, bp - B), (0, 0)))
    if cp != C:
        # Zero weight rows -> cosine 0 in the padded columns; sliced off below.
        wd = jnp.pad(wd, ((0, cp - C), (0, 0)))

    kernel = functools.partial(
        _arcmargin_kernel, s=s, cos_m=cos_m, sin_m=sin_m, th=th, mm=mm,
        easy_margin=easy_margin, mxu_dtype=mxu_dtype)

    out = pl.pallas_call(
        kernel,
        out_shape=jax.ShapeDtypeStruct((bp, cp), jnp.float32),
        grid_spec=pltpu.PrefetchScalarGridSpec(
            num_scalar_prefetch=0,
            grid=(bp // tb, cp // tc),
            in_specs=[
                pl.BlockSpec((tb, D), lambda i, j: (i, 0)),   # x tile
                pl.BlockSpec((tc, D), lambda i, j: (j, 0)),   # streamed W tile
                pl.BlockSpec((tb, 1), lambda i, j: (i, 0)),   # label column
            ],
            out_specs=pl.BlockSpec((tb, tc), lambda i, j: (i, j)),
        ),
        compiler_params=pltpu.CompilerParams(
            dimension_semantics=("parallel", "parallel")),
    )(xd, wd, lab)

    return out[:B, :C]


def _xavier_uniform(key, shape, dtype=jnp.float32):
    fan_out, fan_in = shape
    bound = math.sqrt(6.0 / (fan_in + fan_out))
    return jax.random.uniform(key, shape, dtype, minval=-bound, maxval=bound)


def _reference(x, weight, label, *, s=32.0, m=0.5, easy_margin=False):
    eps = 1e-12
    xn = x / jnp.maximum(jnp.linalg.norm(x, axis=-1, keepdims=True), eps)
    wn = weight / jnp.maximum(
        jnp.linalg.norm(weight, axis=-1, keepdims=True), eps)
    cosine = xn @ wn.T
    sine = jnp.sqrt(jnp.maximum(1.0 - cosine ** 2, 0.0))
    phi = cosine * math.cos(m) - sine * math.sin(m)
    th = math.cos(math.pi - m)
    mm = math.sin(math.pi - m) * m
    if easy_margin:
        phi = jnp.where(cosine > 0, phi, cosine)
    else:
        phi = jnp.where(cosine - th > 0, phi, cosine - mm)
    one_hot = jax.nn.one_hot(label, cosine.shape[1], dtype=jnp.float32)
    return (one_hot * phi + (1.0 - one_hot) * cosine) * s


if __name__ == "__main__":
    in_features = 128
    out_features = 200
    batch = 8

    key = jax.random.PRNGKey(0)
    kx, kw, kl = jax.random.split(key, 3)

    x = jax.random.normal(kx, (batch, in_features), jnp.float32)
    weight = _xavier_uniform(kw, (out_features * 1, in_features))
    label = jax.random.randint(kl, (batch,), 0, out_features, jnp.int32)

    ref = _reference(x, weight, label, s=32.0, m=0.5, easy_margin=False)

    # Default (bf16 MXU) path.
    out_bf16 = arc_margin_product(x, weight, label, s=32.0, m=0.5, sub=1,
                                  easy_margin=False)
    out_bf16 = jax.block_until_ready(out_bf16)
    assert out_bf16.shape == (batch, out_features)
    assert jnp.allclose(out_bf16, ref, atol=0.5, rtol=0.05), \
        "bf16 kernel mismatch vs reference"

    # Full-precision path (f32 MXU operands) against a tight tolerance.
    out_f32 = arc_margin_product(x, weight, label, s=32.0, m=0.5, sub=1,
                                 easy_margin=False, mxu_dtype=jnp.float32)
    out_f32 = jax.block_until_ready(out_f32)
    assert jnp.allclose(out_f32, ref, atol=2e-3, rtol=2e-3), \
        "f32 kernel mismatch vs reference"

    # easy_margin branch coverage.
    ref_em = _reference(x, weight, label, s=32.0, m=0.5, easy_margin=True)
    out_em = arc_margin_product(x, weight, label, s=32.0, m=0.5, sub=1,
                                easy_margin=True, mxu_dtype=jnp.float32)
    out_em = jax.block_until_ready(out_em)
    assert jnp.allclose(out_em, ref_em, atol=2e-3, rtol=2e-3), \
        "easy_margin kernel mismatch vs reference"

    print("KERNEL_OK")
</pallas_src>

<mosaic_0001>
module attributes {stable_mosaic.version = 11 : i64} {
  func.func @_arcmargin_kernel(%arg0: i32, %arg1: i32, %arg2: memref<8x128xbf16, #tpu.memory_space<vmem>>, %arg3: memref<256x128xbf16, #tpu.memory_space<vmem>>, %arg4: memref<8x1xi32, #tpu.memory_space<vmem>>, %arg5: memref<8x256xf32, #tpu.memory_space<vmem>>) attributes {dimension_semantics = [#tpu.dimension_semantics<parallel>, #tpu.dimension_semantics<parallel>], iteration_bounds = array<i64: 1, 1>, scalar_prefetch = 0 : i64, scratch_operands = 0 : i64, tpu.core_type = #tpu.core_type<tc>, window_params = [{transform_indices = @transform_0, window_bounds = array<i64: 8, 128>}, {transform_indices = @transform_1, window_bounds = array<i64: 256, 128>}, {transform_indices = @transform_2, window_bounds = array<i64: 8, 1>}, {transform_indices = @transform_3, window_bounds = array<i64: 8, 256>}]} {
    %c0 = arith.constant 0 : index
    %c0_0 = arith.constant 0 : index
    %0 = vector.load %arg2[%c0, %c0_0] : memref<8x128xbf16, #tpu.memory_space<vmem>>, vector<8x128xbf16>
    %c0_1 = arith.constant 0 : index
    %c0_2 = arith.constant 0 : index
    %1 = vector.load %arg3[%c0_1, %c0_2] : memref<256x128xbf16, #tpu.memory_space<vmem>>, vector<256x128xbf16>
    %2 = arith.extf %0 : vector<8x128xbf16> to vector<8x128xf32>
    %3 = arith.extf %1 : vector<256x128xbf16> to vector<256x128xf32>
    %4 = arith.mulf %2, %2 : vector<8x128xf32>
    %cst = arith.constant dense<0.000000e+00> : vector<8xf32>
    %5 = vector.multi_reduction <add>, %4, %cst [1] : vector<8x128xf32> to vector<8xf32>
    %6 = vector.shape_cast %5 : vector<8xf32> to vector<8x1xf32>
    %cst_3 = arith.constant 1.000000e-24 : f32
    %7 = vector.broadcast %cst_3 : f32 to vector<8x1xf32>
    %8 = arith.maximumf %6, %7 : vector<8x1xf32>
    %9 = math.rsqrt %8 : vector<8x1xf32>
    %10 = arith.mulf %3, %3 : vector<256x128xf32>
    %cst_4 = arith.constant dense<0.000000e+00> : vector<256xf32>
    %11 = vector.multi_reduction <add>, %10, %cst_4 [1] : vector<256x128xf32> to vector<256xf32>
    %12 = vector.shape_cast %11 : vector<256xf32> to vector<256x1xf32>
    %cst_5 = arith.constant 1.000000e-24 : f32
    %13 = vector.broadcast %cst_5 : f32 to vector<256x1xf32>
    %14 = arith.maximumf %12, %13 : vector<256x1xf32>
    %15 = math.rsqrt %14 : vector<256x1xf32>
    %16 = vector.broadcast %15 : vector<256x1xf32> to vector<256x128xf32>
    %17 = arith.mulf %3, %16 : vector<256x128xf32>
    %18 = arith.truncf %17 : vector<256x128xf32> to vector<256x128xbf16>
    %cst_6 = arith.constant dense<0.000000e+00> : vector<8x256xf32>
    %19 = tpu.matmul %0, %18, %cst_6 {dimension_numbers = #tpu.dot_dimension_numbers<[1], [1], [0], [0], [0, 0, 1, 0], [], []>} : vector<8x128xbf16>, vector<256x128xbf16>, vector<8x256xf32> -> vector<8x256xf32>
    %20 = vector.broadcast %9 : vector<8x1xf32> to vector<8x256xf32>
    %21 = arith.mulf %19, %20 : vector<8x256xf32>
    %22 = arith.mulf %21, %21 : vector<8x256xf32>
    %cst_7 = arith.constant 1.000000e+00 : f32
    %23 = vector.broadcast %cst_7 : f32 to vector<8x256xf32>
    %24 = arith.subf %23, %22 : vector<8x256xf32>
    %cst_8 = arith.constant 0.000000e+00 : f32
    %25 = vector.broadcast %cst_8 : f32 to vector<8x256xf32>
    %26 = arith.maximumf %24, %25 : vector<8x256xf32>
    %27 = math.sqrt %26 : vector<8x256xf32>
    %cst_9 = arith.constant 0.87758255 : f32
    %28 = vector.broadcast %cst_9 : f32 to vector<8x256xf32>
    %29 = arith.mulf %21, %28 : vector<8x256xf32>
    %cst_10 = arith.constant 0.47942555 : f32
    %30 = vector.broadcast %cst_10 : f32 to vector<8x256xf32>
    %31 = arith.mulf %27, %30 : vector<8x256xf32>
    %32 = arith.subf %29, %31 : vector<8x256xf32>
    %cst_11 = arith.constant -0.87758255 : f32
    %33 = vector.broadcast %cst_11 : f32 to vector<8x256xf32>
    %34 = arith.subf %21, %33 : vector<8x256xf32>
    %cst_12 = arith.constant 0.000000e+00 : f32
    %35 = vector.broadcast %cst_12 : f32 to vector<8x256xf32>
    %36 = arith.cmpf ogt, %34, %35 : vector<8x256xf32>
    %cst_13 = arith.constant 0.239712775 : f32
    %37 = vector.broadcast %cst_13 : f32 to vector<8x256xf32>
    %38 = arith.subf %21, %37 : vector<8x256xf32>
    %39 = arith.select %36, %32, %38 : vector<8x256xi1>, vector<8x256xf32>
    %c256_i32 = arith.constant 256 : i32
    %40 = arith.muli %arg1, %c256_i32 : i32
    %41 = tpu.iota {dimensions = array<i32: 1>} : vector<8x256xi32>
    %42 = vector.broadcast %40 : i32 to vector<8x256xi32>
    %43 = arith.addi %42, %41 : vector<8x256xi32>
    %c0_14 = arith.constant 0 : index
    %c0_15 = arith.constant 0 : index
    %44 = vector.load %arg4[%c0_14, %c0_15] : memref<8x1xi32, #tpu.memory_space<vmem>>, vector<8x1xi32>
    %45 = vector.broadcast %44 : vector<8x1xi32> to vector<8x256xi32>
    %46 = arith.cmpi eq, %43, %45 : vector<8x256xi32>
    %47 = arith.select %46, %39, %21 : vector<8x256xi1>, vector<8x256xf32>
    %cst_16 = arith.constant 3.200000e+01 : f32
    %48 = vector.broadcast %cst_16 : f32 to vector<8x256xf32>
    %49 = arith.mulf %47, %48 : vector<8x256xf32>
    %c0_17 = arith.constant 0 : index
    %c0_18 = arith.constant 0 : index
    %50 = vector.load %arg5[%c0_17, %c0_18] : memref<8x256xf32, #tpu.memory_space<vmem>>, vector<8x256xf32>
    tpu.vector_store %arg5[%c0_17, %c0_18], %49 {strides = array<i32>} : memref<8x256xf32, #tpu.memory_space<vmem>>, vector<8x256xf32>,
    return
  }
  func.func @transform_0(%arg0: i32, %arg1: i32) -> (i32, i32) {
    %c0_i32 = arith.constant 0 : i32
    %c0_i32_0 = arith.constant 0 : i32
    return %arg0, %c0_i32 : i32, i32
  }
  func.func @transform_1(%arg0: i32, %arg1: i32) -> (i32, i32) {
    %c0_i32 = arith.constant 0 : i32
    %c0_i32_0 = arith.constant 0 : i32
    return %arg1, %c0_i32 : i32, i32
  }
  func.func @transform_2(%arg0: i32, %arg1: i32) -> (i32, i32) {
    %c0_i32 = arith.constant 0 : i32
    %c0_i32_0 = arith.constant 0 : i32
    return %arg0, %c0_i32 : i32, i32
  }
  func.func @transform_3(%arg0: i32, %arg1: i32) -> (i32, i32) {
    %c0_i32 = arith.constant 0 : i32
    return %arg0, %arg1 : i32, i32
  }
}

</mosaic_0001>

<llo_original>
// kernel: tpu_custom_call.1
$region0: #{tpu_custom_call.1}
  #allocation0 [shape = 'u32[]', space=smem, size = 0x4, offset = 0x4, fixed_abs, tag = 'smem constant byte address 0x4 - core index']
  #allocation1 [shape = 'u32[144,128]{1,0:T(1,128)}', space=vmem, size = 0x12000, scoped, tag = 'internal scratch']
  %s0 = inlined_call_operand.vmem [shape: bf16[8,128], index: 0, kind: input, shape index: {}]
  %s1 = inlined_call_operand.hbm [shape: bf16[256,128], index: 1, kind: input, shape index: {}]
  %s2 = inlined_call_operand.vmem [shape: s32[8,1], index: 2, kind: input, shape index: {}]
  %s3 = inlined_call_operand.hbm [shape: f32[8,256], index: 3, kind: output, shape index: {}]
  %s4 = sld [smem:[#allocation0]]
  $region26: #{tpu_custom_call.1} parent=0
    _
  %s6 = ssub.s32 1, %s4
  %s7 = scalar_select 0, %s6, %s4
  $region1: #{tpu_custom_call.1} parent=0
    #allocation2 [shape = 'u8[65536]{0}', space=vmem, size = 0x10000, scoped, tag = 'input window, operand 1, single buffered']
    #allocation3 [shape = 's32[1]{0}', space=sflag, size = 0x4, scoped, tag = 'scoped memory for tpu_custom_call.1']
    #allocation4 [shape = 's32[1]{0}', space=sflag, size = 0x4, scoped, tag = 'scoped memory for tpu_custom_call.1']
    #allocation5 [shape = 'u8[8192]{0}', space=vmem, size = 0x2000, scoped, tag = 'output window, operand 0, single buffered']
    %8 = vsyncpa [#allocation3], 0
    %9 = vsyncpa [#allocation4], 0
    // Predicated region
    $region2: #{tpu_custom_call.1} parent=1 // pred_check
      _
    $region3: #{tpu_custom_call.1} parent=1 // pred_check_branch
      %11 = sbr.rel (0) target = $region5
    $region4: #{tpu_custom_call.1} parent=1 // pred_region
      _
    $region5: #{tpu_custom_call.1} parent=1 // pred_fallthru
      _
    // Predicated region
    $region6: #{tpu_custom_call.1} parent=1 // pred_check
      _
    $region7: #{tpu_custom_call.1} parent=1 // pred_check_branch
      %13 = sbr.rel (0) target = $region9
    $region8: #{tpu_custom_call.1} parent=1 // pred_region
      %s15 = ssub.s32 2048, 2048
      %16 = vsyncadd [#allocation3], %s15
      %s17 = sshll.u32 [#allocation2], 4
      %s18 = int_to_ptr.vmem [resolvable:$true] %s17
      %23 = dma.hbm_to_vmem [thread:$0]  %s1, 2048, %s18, [#allocation3], 64, 64, 4
    $region9: #{tpu_custom_call.1} parent=1 // pred_fallthru
      _
    // Predicated region
    $region10: #{tpu_custom_call.1} parent=1 // pred_check
      _
    $region11: #{tpu_custom_call.1} parent=1 // pred_check_branch
      %25 = sbr.rel (0) target = $region13
    $region12: #{tpu_custom_call.1} parent=1 // pred_region
      _
    $region13: #{tpu_custom_call.1} parent=1 // pred_fallthru
      _
    // Predicated region
    $region14: #{tpu_custom_call.1} parent=1 // pred_check
      _
    $region15: #{tpu_custom_call.1} parent=1 // pred_check_branch
      %27 = sbr.rel (0) target = $region17
    $region16: #{tpu_custom_call.1} parent=1 // pred_region
      %28 = dma.done [#allocation3], 2048
    $region17: #{tpu_custom_call.1} parent=1 // pred_fallthru
      _
    %v30 = vld [vmem:[%s0] sm:$0xf]
    %v31 = vld [vmem:[#allocation2] sm:$0xf]
    %v32 = vld [vmem:[#allocation2 + $0x4] sm:$0xf]
    %v33 = vld [vmem:[#allocation2 + $0x8] sm:$0xf]
    %v34 = vld [vmem:[#allocation2 + $0xc] sm:$0xf]
    %v35 = vld [vmem:[#allocation2 + $0x10] sm:$0xf]
    %v36 = vld [vmem:[#allocation2 + $0x14] sm:$0xf]
    %v37 = vld [vmem:[#allocation2 + $0x18] sm:$0xf]
    %v38 = vld [vmem:[#allocation2 + $0x1c] sm:$0xf]
    %v39 = vld [vmem:[#allocation2 + $0x20] sm:$0xf]
    %v40 = vld [vmem:[#allocation2 + $0x24] sm:$0xf]
    %v41 = vld [vmem:[#allocation2 + $0x28] sm:$0xf]
    %v42 = vld [vmem:[#allocation2 + $0x2c] sm:$0xf]
    %v43 = vld [vmem:[#allocation2 + $0x30] sm:$0xf]
    %v44 = vld [vmem:[#allocation2 + $0x34] sm:$0xf]
    %v45 = vld [vmem:[#allocation2 + $0x38] sm:$0xf]
    %v46 = vld [vmem:[#allocation2 + $0x3c] sm:$0xf]
    %v47 = vld [vmem:[#allocation2 + $0x40] sm:$0xf]
    %v48 = vld [vmem:[#allocation2 + $0x44] sm:$0xf]
    %v49 = vld [vmem:[#allocation2 + $0x48] sm:$0xf]
    %v50 = vld [vmem:[#allocation2 + $0x4c] sm:$0xf]
    %v51 = vld [vmem:[#allocation2 + $0x50] sm:$0xf]
    %v52 = vld [vmem:[#allocation2 + $0x54] sm:$0xf]
    %v53 = vld [vmem:[#allocation2 + $0x58] sm:$0xf]
    %v54 = vld [vmem:[#allocation2 + $0x5c] sm:$0xf]
    %v55 = vld [vmem:[#allocation2 + $0x60] sm:$0xf]
    %v56 = vld [vmem:[#allocation2 + $0x64] sm:$0xf]
    %v57 = vld [vmem:[#allocation2 + $0x68] sm:$0xf]
    %v58 = vld [vmem:[#allocation2 + $0x6c] sm:$0xf]
    %v59 = vld [vmem:[#allocation2 + $0x70] sm:$0xf]
    %v60 = vld [vmem:[#allocation2 + $0x74] sm:$0xf]
    %v61 = vld [vmem:[#allocation2 + $0x78] sm:$0xf]
    %v62 = vld [vmem:[#allocation2 + $0x7c] sm:$0xf]
    %v63 = vunpack.c.l.bf16 %v30
    %v64 = vunpack.c.l.bf16 %v31
    %v65 = vunpack.c.l.bf16 %v32
    %v66 = vunpack.c.l.bf16 %v33
    %v67 = vunpack.c.l.bf16 %v34
    %v68 = vunpack.c.l.bf16 %v35
    %v69 = vunpack.c.l.bf16 %v36
    %v70 = vunpack.c.l.bf16 %v37
    %v71 = vunpack.c.l.bf16 %v38
    %v72 = vunpack.c.l.bf16 %v39
    %v73 = vunpack.c.l.bf16 %v40
    %v74 = vunpack.c.l.bf16 %v41
    %v75 = vunpack.c.l.bf16 %v42
    %v76 = vunpack.c.l.bf16 %v43
    %v77 = vunpack.c.l.bf16 %v44
    %v78 = vunpack.c.l.bf16 %v45
    %v79 = vunpack.c.l.bf16 %v46
    %v80 = vunpack.c.l.bf16 %v47
    %v81 = vunpack.c.l.bf16 %v48
    %v82 = vunpack.c.l.bf16 %v49
    %v83 = vunpack.c.l.bf16 %v50
    %v84 = vunpack.c.l.bf16 %v51
    %v85 = vunpack.c.l.bf16 %v52
    %v86 = vunpack.c.l.bf16 %v53
    %v87 = vunpack.c.l.bf16 %v54
    %v88 = vunpack.c.l.bf16 %v55
    %v89 = vunpack.c.l.bf16 %v56
    %v90 = vunpack.c.l.bf16 %v57
    %v91 = vunpack.c.l.bf16 %v58
    %v92 = vunpack.c.l.bf16 %v59
    %v93 = vunpack.c.l.bf16 %v60
    %v94 = vunpack.c.l.bf16 %v61
    %v95 = vunpack.c.l.bf16 %v62
    %v96 = vmul.f32 %v63, %v63
    %97 = vadd.xlane.f32.xlu0 %v96
    %v98 = vpop.xlane.xlu0 %97
    %v99 = vmax.f32 %v98, 1e-24
    %v100 = vrsqrt.pop %v99
    %v101 = vmul.f32 %v64, %v64
    %v102 = vmul.f32 %v65, %v65
    %v103 = vmul.f32 %v66, %v66
    %v104 = vmul.f32 %v67, %v67
    %v105 = vmul.f32 %v68, %v68
    %v106 = vmul.f32 %v69, %v69
    %v107 = vmul.f32 %v70, %v70
    %v108 = vmul.f32 %v71, %v71
    %v109 = vmul.f32 %v72, %v72
    %v110 = vmul.f32 %v73, %v73
    %v111 = vmul.f32 %v74, %v74
    %v112 = vmul.f32 %v75, %v75
    %v113 = vmul.f32 %v76, %v76
    %v114 = vmul.f32 %v77, %v77
    %v115 = vmul.f32 %v78, %v78
    %v116 = vmul.f32 %v79, %v79
    %v117 = vmul.f32 %v80, %v80
    %v118 = vmul.f32 %v81, %v81
    %v119 = vmul.f32 %v82, %v82
    %v120 = vmul.f32 %v83, %v83
    %v121 = vmul.f32 %v84, %v84
    %v122 = vmul.f32 %v85, %v85
    %v123 = vmul.f32 %v86, %v86
    %v124 = vmul.f32 %v87, %v87
    %v125 = vmul.f32 %v88, %v88
    %v126 = vmul.f32 %v89, %v89
    %v127 = vmul.f32 %v90, %v90
    %v128 = vmul.f32 %v91, %v91
    %v129 = vmul.f32 %v92, %v92
    %v130 = vmul.f32 %v93, %v93
    %v131 = vmul.f32 %v94, %v94
    %v132 = vmul.f32 %v95, %v95
    %133 = vadd.xlane.f32.xlu0 %v101
    %v134 = vpop.xlane.xlu0 %133
    %135 = vadd.xlane.f32.xlu0 %v102
    %v136 = vpop.xlane.xlu0 %135
    %137 = vadd.xlane.f32.xlu0 %v103
    %v138 = vpop.xlane.xlu0 %137
    %139 = vadd.xlane.f32.xlu0 %v104
    %v140 = vpop.xlane.xlu0 %139
    %141 = vadd.xlane.f32.xlu0 %v105
    %v142 = vpop.xlane.xlu0 %141
    %143 = vadd.xlane.f32.xlu0 %v106
    %v144 = vpop.xlane.xlu0 %143
    %145 = vadd.xlane.f32.xlu0 %v107
    %v146 = vpop.xlane.xlu0 %145
    %147 = vadd.xlane.f32.xlu0 %v108
    %v148 = vpop.xlane.xlu0 %147
    %149 = vadd.xlane.f32.xlu0 %v109
    %v150 = vpop.xlane.xlu0 %149
    %151 = vadd.xlane.f32.xlu0 %v110
    %v152 = vpop.xlane.xlu0 %151
    %153 = vadd.xlane.f32.xlu0 %v111
    %v154 = vpop.xlane.xlu0 %153
    %155 = vadd.xlane.f32.xlu0 %v112
    %v156 = vpop.xlane.xlu0 %155
    %157 = vadd.xlane.f32.xlu0 %v113
    %v158 = vpop.xlane.xlu0 %157
    %159 = vadd.xlane.f32.xlu0 %v114
    %v160 = vpop.xlane.xlu0 %159
    %161 = vadd.xlane.f32.xlu0 %v115
    %v162 = vpop.xlane.xlu0 %161
    %163 = vadd.xlane.f32.xlu0 %v116
    %v164 = vpop.xlane.xlu0 %163
    %165 = vadd.xlane.f32.xlu0 %v117
    %v166 = vpop.xlane.xlu0 %165
    %167 = vadd.xlane.f32.xlu0 %v118
    %v168 = vpop.xlane.xlu0 %167
    %169 = vadd.xlane.f32.xlu0 %v119
    %v170 = vpop.xlane.xlu0 %169
    %171 = vadd.xlane.f32.xlu0 %v120
    %v172 = vpop.xlane.xlu0 %171
    %173 = vadd.xlane.f32.xlu0 %v121
    %v174 = vpop.xlane.xlu0 %173
    %175 = vadd.xlane.f32.xlu0 %v122
    %v176 = vpop.xlane.xlu0 %175
    %177 = vadd.xlane.f32.xlu0 %v123
    %v178 = vpop.xlane.xlu0 %177
    %179 = vadd.xlane.f32.xlu0 %v124
    %v180 = vpop.xlane.xlu0 %179
    %181 = vadd.xlane.f32.xlu0 %v125
    %v182 = vpop.xlane.xlu0 %181
    %183 = vadd.xlane.f32.xlu0 %v126
    %v184 = vpop.xlane.xlu0 %183
    %185 = vadd.xlane.f32.xlu0 %v127
    %v186 = vpop.xlane.xlu0 %185
    %187 = vadd.xlane.f32.xlu0 %v128
    %v188 = vpop.xlane.xlu0 %187
    %189 = vadd.xlane.f32.xlu0 %v129
    %v190 = vpop.xlane.xlu0 %189
    %191 = vadd.xlane.f32.xlu0 %v130
    %v192 = vpop.xlane.xlu0 %191
    %193 = vadd.xlane.f32.xlu0 %v131
    %v194 = vpop.xlane.xlu0 %193
    %195 = vadd.xlane.f32.xlu0 %v132
    %v196 = vpop.xlane.xlu0 %195
    %v197 = vmax.f32 %v134, 1e-24
    %v198 = vmax.f32 %v136, 1e-24
    %v199 = vmax.f32 %v138, 1e-24
    %v200 = vmax.f32 %v140, 1e-24
    %v201 = vmax.f32 %v142, 1e-24
    %v202 = vmax.f32 %v144, 1e-24
    %v203 = vmax.f32 %v146, 1e-24
    %v204 = vmax.f32 %v148, 1e-24
    %v205 = vmax.f32 %v150, 1e-24
    %v206 = vmax.f32 %v152, 1e-24
    %v207 = vmax.f32 %v154, 1e-24
    %v208 = vmax.f32 %v156, 1e-24
    %v209 = vmax.f32 %v158, 1e-24
    %v210 = vmax.f32 %v160, 1e-24
    %v211 = vmax.f32 %v162, 1e-24
    %v212 = vmax.f32 %v164, 1e-24
    %v213 = vmax.f32 %v166, 1e-24
    %v214 = vmax.f32 %v168, 1e-24
    %v215 = vmax.f32 %v170, 1e-24
    %v216 = vmax.f32 %v172, 1e-24
    %v217 = vmax.f32 %v174, 1e-24
    %v218 = vmax.f32 %v176, 1e-24
    %v219 = vmax.f32 %v178, 1e-24
    %v220 = vmax.f32 %v180, 1e-24
    %v221 = vmax.f32 %v182, 1e-24
    %v222 = vmax.f32 %v184, 1e-24
    %v223 = vmax.f32 %v186, 1e-24
    %v224 = vmax.f32 %v188, 1e-24
    %v225 = vmax.f32 %v190, 1e-24
    %v226 = vmax.f32 %v192, 1e-24
    %v227 = vmax.f32 %v194, 1e-24
    %v228 = vmax.f32 %v196, 1e-24
    %v229 = vrsqrt.pop %v197
    %v230 = vrsqrt.pop %v198
    %v231 = vrsqrt.pop %v199
    %v232 = vrsqrt.pop %v200
    %v233 = vrsqrt.pop %v201
    %v234 = vrsqrt.pop %v202
    %v235 = vrsqrt.pop %v203
    %v236 = vrsqrt.pop %v204
    %v237 = vrsqrt.pop %v205
    %v238 = vrsqrt.pop %v206
    %v239 = vrsqrt.pop %v207
    %v240 = vrsqrt.pop %v208
    %v241 = vrsqrt.pop %v209
    %v242 = vrsqrt.pop %v210
    %v243 = vrsqrt.pop %v211
    %v244 = vrsqrt.pop %v212
    %v245 = vrsqrt.pop %v213
    %v246 = vrsqrt.pop %v214
    %v247 = vrsqrt.pop %v215
    %v248 = vrsqrt.pop %v216
    %v249 = vrsqrt.pop %v217
    %v250 = vrsqrt.pop %v218
    %v251 = vrsqrt.pop %v219
    %v252 = vrsqrt.pop %v220
    %v253 = vrsqrt.pop %v221
    %v254 = vrsqrt.pop %v222
    %v255 = vrsqrt.pop %v223
    %v256 = vrsqrt.pop %v224
    %v257 = vrsqrt.pop %v225
    %v258 = vrsqrt.pop %v226
    %v259 = vrsqrt.pop %v227
    %v260 = vrsqrt.pop %v228
    %v261 = vmul.f32 %v64, %v229
    %v262 = vmul.f32 %v65, %v230
    %v263 = vmul.f32 %v66, %v231
    %v264 = vmul.f32 %v67, %v232
    %v265 = vmul.f32 %v68, %v233
    %v266 = vmul.f32 %v69, %v234
    %v267 = vmul.f32 %v70, %v235
    %v268 = vmul.f32 %v71, %v236
    %v269 = vmul.f32 %v72, %v237
    %v270 = vmul.f32 %v73, %v238
    %v271 = vmul.f32 %v74, %v239
    %v272 = vmul.f32 %v75, %v240
    %v273 = vmul.f32 %v76, %v241
    %v274 = vmul.f32 %v77, %v242
    %v275 = vmul.f32 %v78, %v243
    %v276 = vmul.f32 %v79, %v244
    %v277 = vmul.f32 %v80, %v245
    %v278 = vmul.f32 %v81, %v246
    %v279 = vmul.f32 %v82, %v247
    %v280 = vmul.f32 %v83, %v248
    %v281 = vmul.f32 %v84, %v249
    %v282 = vmul.f32 %v85, %v250
    %v283 = vmul.f32 %v86, %v251
    %v284 = vmul.f32 %v87, %v252
    %v285 = vmul.f32 %v88, %v253
    %v286 = vmul.f32 %v89, %v254
    %v287 = vmul.f32 %v90, %v255
    %v288 = vmul.f32 %v91, %v256
    %v289 = vmul.f32 %v92, %v257
    %v290 = vmul.f32 %v93, %v258
    %v291 = vmul.f32 %v94, %v259
    %v292 = vmul.f32 %v95, %v260
    %v293 = vpack.c.bf16 %v262, %v261
    %v294 = vpack.c.bf16 %v264, %v263
    %v295 = vpack.c.bf16 %v266, %v265
    %v296 = vpack.c.bf16 %v268, %v267
    %v297 = vpack.c.bf16 %v270, %v269
    %v298 = vpack.c.bf16 %v272, %v271
    %v299 = vpack.c.bf16 %v274, %v273
    %v300 = vpack.c.bf16 %v276, %v275
    %v301 = vpack.c.bf16 %v278, %v277
    %v302 = vpack.c.bf16 %v280, %v279
    %v303 = vpack.c.bf16 %v282, %v281
    %v304 = vpack.c.bf16 %v284, %v283
    %v305 = vpack.c.bf16 %v286, %v285
    %v306 = vpack.c.bf16 %v288, %v287
    %v307 = vpack.c.bf16 %v290, %v289
    %v308 = vpack.c.bf16 %v292, %v291
    %309 = vmatprep.subr.bf16.mxu0 0
    %310 = vmatpush1.bf16.xpose.msra.mxu0 %v293
    %311 = vmatprep.subr.bf16.mxu0 0
    %312 = vmatpush1.bf16.xpose.msra.mxu0 %v294
    %313 = vmatprep.subr.bf16.mxu0 0
    %314 = vmatpush1.bf16.xpose.msra.mxu0 %v295
    %315 = vmatprep.subr.bf16.mxu0 0
    %316 = vmatpush1.bf16.xpose.msra.mxu0 %v296
    %317 = vmatprep.subr.bf16.mxu0 0
    %318 = vmatpush1.bf16.xpose.msra.mxu0 %v297
    %319 = vmatprep.subr.bf16.mxu0 0
    %320 = vmatpush1.bf16.xpose.msra.mxu0 %v298
    %321 = vmatprep.subr.bf16.mxu0 0
    %322 = vmatpush1.bf16.xpose.msra.mxu0 %v299
    %323 = vmatprep.subr.bf16.mxu0 0
    %324 = vmatpush1.bf16.xpose.msra.mxu0 %v300
    %325 = vmatprep.subr.bf16.mxu0 0
    %326 = vmatpush1.bf16.xpose.msra.mxu0 %v301
    %327 = vmatprep.subr.bf16.mxu0 0
    %328 = vmatpush1.bf16.xpose.msra.mxu0 %v302
    %329 = vmatprep.subr.bf16.mxu0 0
    %330 = vmatpush1.bf16.xpose.msra.mxu0 %v303
    %331 = vmatprep.subr.bf16.mxu0 0
    %332 = vmatpush1.bf16.xpose.msra.mxu0 %v304
    %333 = vmatprep.subr.bf16.mxu0 0
    %334 = vmatpush1.bf16.xpose.msra.mxu0 %v305
    %335 = vmatprep.subr.bf16.mxu0 0
    %336 = vmatpush1.bf16.xpose.msra.mxu0 %v306
    %337 = vmatprep.subr.bf16.mxu0 0
    %338 = vmatpush1.bf16.xpose.msra.mxu0 %v307
    %339 = vmatprep.subr.bf16.mxu0 0
    %340 = vmatpush1.bf16.xpose.msra.mxu0 %v308
    %341 = vmatprep.mubr.bf16.mxu0 0
    %342 = vmatmul.mubr.bf16.gmra.mrb[0].mxu0 %v30
    %v343 = vpop.f32.mrb[0].mxu0
    %v344 = vadd.f32 0.0, %v343
    %v345 = vpop.f32.mrb[0].mxu0
    %v346 = vadd.f32 0.0, %v345
    %v347 = vpop.f32.mrb[0].mxu0
    %v348 = vpop.f32.mrb[0].mxu0
    %349 = vdwg.mxu0
    %v350 = vmul.f32 %v344, %v100
    %v351 = vmul.f32 %v346, %v100
    %v352 = vmul.f32 %v350, %v350
    %v353 = vmul.f32 %v351, %v351
    %v354 = vsub.f32 1.0, %v352
    %v355 = vsub.f32 1.0, %v353
    %v356 = vmax.f32 %v354, 0.0
    %v357 = vmax.f32 %v355, 0.0
    %v358 = vrsqrt.pop %v356
    %v359 = vmul.f32 %v356, %v358
    %vm360 = vcmp.eq.f32.partialorder %v356, inf
    %v361 = vsel %vm360, %v356, %v359
    %vm362 = vcmp.eq.f32.partialorder %v356, 0.0
    %v363 = vand.u32 %v356, 2147483648
    %v364 = vsel %vm362, %v363, %v361
    %v365 = vrsqrt.pop %v357
    %v366 = vmul.f32 %v357, %v365
    %vm367 = vcmp.eq.f32.partialorder %v357, inf
    %v368 = vsel %vm367, %v357, %v366
    %vm369 = vcmp.eq.f32.partialorder %v357, 0.0
    %v370 = vand.u32 %v357, 2147483648
    %v371 = vsel %vm369, %v370, %v368
    %v372 = vmul.f32 %v350, 0.87758255
    %v373 = vmul.f32 %v351, 0.87758255
    %v374 = vmul.f32 %v364, 0.47942555
    %v375 = vmul.f32 %v371, 0.47942555
    %v376 = vsub.f32 %v372, %v374
    %v377 = vsub.f32 %v373, %v375
    %v378 = vsub.f32 %v350, -0.87758255
    %v379 = vsub.f32 %v351, -0.87758255
    %vm380 = vcmp.gt.f32.partialorder %v378, 0.0
    %vm381 = vcmp.gt.f32.partialorder %v379, 0.0
    %v382 = vsub.f32 %v350, 0.23971277
    %v383 = vsub.f32 %v351, 0.23971277
    %v384 = vsel %vm380, %v376, %v382
    %v385 = vsel %vm381, %v377, %v383
    %s386 = smul.u32 0, 256
    %v387 = vlaneseq
    %v388 = vand.u32 %v387, 127
    %v389 = vadd.s32 %v388, 128
    %v390 = vstv %s386
    %v391 = vadd.s32 %v390, %v388
    %v392 = vadd.s32 %v390, %v389
    %v393 = vld [vmem:[%s2] sm:$0xff]
    %394 = vset.pattern.permute.xlu0 0
    %395 = vperm.xlu0 %394, %v393
    %v396 = vpop.permute.xlu0 %395
    %vm397 = vcmp.eq.s32.totalorder %v391, %v396
    %vm398 = vcmp.eq.s32.totalorder %v392, %v396
    %v399 = vsel %vm397, %v384, %v350
    %v400 = vsel %vm398, %v385, %v351
    %v401 = vmul.f32 %v399, 32.0
    %v402 = vmul.f32 %v400, 32.0
    %403 = vst [vmem:[#allocation5] sm:$0xff] %v401
    %404 = vst [vmem:[#allocation5 + $0x8] sm:$0xff] %v402
    // Predicated region
    $region18: #{tpu_custom_call.1} parent=1 // pred_check
      _
    $region19: #{tpu_custom_call.1} parent=1 // pred_check_branch
      %406 = sbr.rel (0) target = $region21
    $region20: #{tpu_custom_call.1} parent=1 // pred_region
      %s408 = ssub.s32 256, 256
      %409 = vsyncadd [#allocation4], %s408
      %s411 = sshll.u32 [#allocation5], 4
      %s412 = int_to_ptr.vmem [resolvable:$true] %s411
      %414 = dma.vmem_to_hbm [thread:$0]  %s412, 256, %s3, [#allocation4]
    $region21: #{tpu_custom_call.1} parent=1 // pred_fallthru
      _
    // Predicated region
    $region22: #{tpu_custom_call.1} parent=1 // pred_check
      _
    $region23: #{tpu_custom_call.1} parent=1 // pred_check_branch
      %416 = sbr.rel (0) target = $region25
    $region24: #{tpu_custom_call.1} parent=1 // pred_region
      %417 = dma.done [#allocation4], 256
    $region25: #{tpu_custom_call.1} parent=1 // pred_fallthru
      _
    %418 = vsyncpa [#allocation3], 1
    %419 = vsyncpa [#allocation4], 1

</llo_original>
